<compile_context>
chip_gen: v5e
topology: v5e:2x2
jax: 0.10.0
libtpu: 0.0.40
codegen_flags: <defaults>
</compile_context>

<pallas_src>
import jax
import jax.numpy as jnp
from jax.experimental import pallas as pl
from jax.experimental.pallas import tpu as pltpu

N_EMBED = 32          # n_embed in the PyTorch module
HIDDEN = 4 * N_EMBED  # 4 * n_embed
DROPOUT_P = 0.1       # unused at inference (identity)


def _round_up(a: int, b: int) -> int:
    return ((a + b - 1) // b) * b


def _cdiv(a: int, b: int) -> int:
    return -(-a // b)


def ffn_kernel(x_ref, w1_ref, b1_ref, w2_ref, b2_ref, o_ref):
    # hidden = relu(x @ W1 + b1); bf16 operands, f32 accumulation on the MXU.
    h = jnp.dot(x_ref[...], w1_ref[...], preferred_element_type=jnp.float32)
    h = jnp.maximum(h + b1_ref[...], 0.0)          # f32 epilogue (v5e-safe)
    # out = hidden @ W2 + b2; re-cast hidden to the weight dtype for the MXU.
    y = jnp.dot(h.astype(w2_ref.dtype), w2_ref[...],
                preferred_element_type=jnp.float32)
    o_ref[...] = (y + b2_ref[...]).astype(o_ref.dtype)


def prepare_ffn_params(w1, b1, w2, b2, compute_dtype=jnp.bfloat16):
    """One-time weight prep (cast / reshape) — hoisted out of the hot path."""
    return (w1.astype(compute_dtype),
            b1.astype(jnp.float32).reshape(1, -1),
            w2.astype(compute_dtype),
            b2.astype(jnp.float32).reshape(1, -1))


def mlp_forward(x, w1_c, b1_c, w2_c, b2_c, *, block_rows=1024,
                compute_dtype=jnp.bfloat16):
    """x: (..., E); w1_c: (E, H) bf16; b1_c: (1, H) f32; w2_c: (H, E) bf16;
    b2_c: (1, E) f32 — as produced by prepare_ffn_params."""
    orig_shape = x.shape
    E = orig_shape[-1]
    H = w1_c.shape[1]

    rows = 1
    for d in orig_shape[:-1]:
        rows *= d

    # ---- adaptive row tiling -------------------------------------------------
    # Round rows to the bf16 sublane-packing granularity (16), pick the number
    # of grid steps, then size TB so padding waste is < n_steps*16 rows.
    rows16 = _round_up(rows, 16)
    n_steps = max(1, _cdiv(rows16, block_rows))
    if rows16 >= 32:
        n_steps = max(n_steps, 2)   # v7x: keep both TensorCores busy
    TB = _round_up(_cdiv(rows16, n_steps), 16)
    rows_pad = n_steps * TB

    # ---- per-call input prep: one cast, one (cheap) row pad if needed --------
    x2 = x.reshape(rows, E).astype(compute_dtype)
    if rows_pad != rows:
        x2 = jnp.pad(x2, ((0, rows_pad - rows), (0, 0)))

    # ---- cost estimate with true (unpadded) flops / bytes --------------------
    wbytes = jnp.dtype(compute_dtype).itemsize
    flops = 4 * rows * E * H
    bytes_accessed = (rows * E * wbytes          # x in (bf16)
                      + E * H * wbytes           # W1
                      + H * E * wbytes           # W2
                      + H * 4 + E * 4            # biases (f32)
                      + rows * E * 4)            # out (f32)

    out = pl.pallas_call(
        ffn_kernel,
        out_shape=jax.ShapeDtypeStruct((rows_pad, E), x.dtype),
        grid_spec=pltpu.PrefetchScalarGridSpec(
            num_scalar_prefetch=0,
            grid=(n_steps,),
            in_specs=[
                pl.BlockSpec((TB, E), lambda i: (i, 0)),   # x tile (pipelined)
                pl.BlockSpec((E, H), lambda i: (0, 0)),    # W1 (VMEM-resident)
                pl.BlockSpec((1, H), lambda i: (0, 0)),    # b1 (resident)
                pl.BlockSpec((H, E), lambda i: (0, 0)),    # W2 (resident)
                pl.BlockSpec((1, E), lambda i: (0, 0)),    # b2 (resident)
            ],
            out_specs=pl.BlockSpec((TB, E), lambda i: (i, 0)),
        ),
        compiler_params=pltpu.CompilerParams(
            dimension_semantics=("parallel",),
        ),
        cost_estimate=pl.CostEstimate(
            flops=flops, transcendentals=0, bytes_accessed=bytes_accessed),
    )(x2, w1_c, b1_c, w2_c, b2_c)

    if rows_pad != rows:
        out = out[:rows]
    return out.reshape(orig_shape)


def reference(x, w1, b1, w2, b2):
    h = jnp.maximum(x @ w1 + b1, 0.0)
    return h @ w2 + b2


if __name__ == "__main__":
    key = jax.random.PRNGKey(0)
    k_x, k_w1, k_b1, k_w2, k_b2 = jax.random.split(key, 5)

    B, S = 2, 8
    x = jax.random.normal(k_x, (B, S, N_EMBED), dtype=jnp.float32)

    # nn.Linear-style init: uniform(-1/sqrt(fan_in), 1/sqrt(fan_in)).
    bound1 = 1.0 / (N_EMBED ** 0.5)
    w1 = jax.random.uniform(k_w1, (N_EMBED, HIDDEN), jnp.float32, -bound1, bound1)
    b1 = jax.random.uniform(k_b1, (HIDDEN,), jnp.float32, -bound1, bound1)
    bound2 = 1.0 / (HIDDEN ** 0.5)
    w2 = jax.random.uniform(k_w2, (HIDDEN, N_EMBED), jnp.float32, -bound2, bound2)
    b2 = jax.random.uniform(k_b2, (N_EMBED,), jnp.float32, -bound2, bound2)

    # Weight prep happens once, outside the per-call hot path.
    params = prepare_ffn_params(w1, b1, w2, b2)

    out = jax.block_until_ready(mlp_forward(x, *params))
    ref = reference(x, w1, b1, w2, b2)

    assert out.shape == (B, S, N_EMBED), out.shape
    # bf16 matmul operands with f32 accumulation => loose tolerance vs f32 ref.
    assert jnp.allclose(out, ref, atol=2e-2, rtol=2e-2), "mismatch vs reference"
    print("KERNEL_OK")
</pallas_src>

<mosaic_0001>
module attributes {stable_mosaic.version = 11 : i64} {
  func.func @ffn_kernel(%arg0: i32, %arg1: memref<16x32xbf16, #tpu.memory_space<vmem>>, %arg2: memref<32x128xbf16, #tpu.memory_space<vmem>>, %arg3: memref<1x128xf32, #tpu.memory_space<vmem>>, %arg4: memref<128x32xbf16, #tpu.memory_space<vmem>>, %arg5: memref<1x32xf32, #tpu.memory_space<vmem>>, %arg6: memref<16x32xf32, #tpu.memory_space<vmem>>) attributes {dimension_semantics = [#tpu.dimension_semantics<parallel>], iteration_bounds = array<i64: 1>, scalar_prefetch = 0 : i64, scratch_operands = 0 : i64, tpu.core_type = #tpu.core_type<tc>, window_params = [{transform_indices = @transform_0, window_bounds = array<i64: 16, 32>}, {pipeline_mode = #tpu.pipeline_mode<synchronous>, transform_indices = @transform_1, window_bounds = array<i64: 32, 128>}, {pipeline_mode = #tpu.pipeline_mode<synchronous>, transform_indices = @transform_2, window_bounds = array<i64: 1, 128>}, {pipeline_mode = #tpu.pipeline_mode<synchronous>, transform_indices = @transform_3, window_bounds = array<i64: 128, 32>}, {pipeline_mode = #tpu.pipeline_mode<synchronous>, transform_indices = @transform_4, window_bounds = array<i64: 1, 32>}, {transform_indices = @transform_5, window_bounds = array<i64: 16, 32>}]} {
    %c0 = arith.constant 0 : index
    %c0_0 = arith.constant 0 : index
    %0 = vector.load %arg1[%c0, %c0_0] : memref<16x32xbf16, #tpu.memory_space<vmem>>, vector<16x32xbf16>
    %c0_1 = arith.constant 0 : index
    %c0_2 = arith.constant 0 : index
    %1 = vector.load %arg2[%c0_1, %c0_2] : memref<32x128xbf16, #tpu.memory_space<vmem>>, vector<32x128xbf16>
    %cst = arith.constant dense<0.000000e+00> : vector<16x128xf32>
    %2 = tpu.matmul %0, %1, %cst {dimension_numbers = #tpu.dot_dimension_numbers<[1], [0], [0], [1], [0, 0, 1, 1], [], []>} : vector<16x32xbf16>, vector<32x128xbf16>, vector<16x128xf32> -> vector<16x128xf32>
    %c0_3 = arith.constant 0 : index
    %c0_4 = arith.constant 0 : index
    %3 = vector.load %arg3[%c0_3, %c0_4] : memref<1x128xf32, #tpu.memory_space<vmem>>, vector<1x128xf32>
    %4 = vector.broadcast %3 : vector<1x128xf32> to vector<16x128xf32>
    %5 = arith.addf %2, %4 : vector<16x128xf32>
    %cst_5 = arith.constant 0.000000e+00 : f32
    %6 = vector.broadcast %cst_5 : f32 to vector<16x128xf32>
    %7 = arith.maximumf %5, %6 : vector<16x128xf32>
    %8 = arith.truncf %7 : vector<16x128xf32> to vector<16x128xbf16>
    %c0_6 = arith.constant 0 : index
    %c0_7 = arith.constant 0 : index
    %9 = vector.load %arg4[%c0_6, %c0_7] : memref<128x32xbf16, #tpu.memory_space<vmem>>, vector<128x32xbf16>
    %cst_8 = arith.constant dense<0.000000e+00> : vector<16x32xf32>
    %10 = tpu.matmul %8, %9, %cst_8 {dimension_numbers = #tpu.dot_dimension_numbers<[1], [0], [0], [1], [0, 0, 1, 1], [], []>} : vector<16x128xbf16>, vector<128x32xbf16>, vector<16x32xf32> -> vector<16x32xf32>
    %c0_9 = arith.constant 0 : index
    %c0_10 = arith.constant 0 : index
    %11 = vector.load %arg5[%c0_9, %c0_10] : memref<1x32xf32, #tpu.memory_space<vmem>>, vector<1x32xf32>
    %12 = vector.broadcast %11 : vector<1x32xf32> to vector<16x32xf32>
    %13 = arith.addf %10, %12 : vector<16x32xf32>
    %c0_11 = arith.constant 0 : index
    %c0_12 = arith.constant 0 : index
    %14 = vector.load %arg6[%c0_11, %c0_12] : memref<16x32xf32, #tpu.memory_space<vmem>>, vector<16x32xf32>
    tpu.vector_store %arg6[%c0_11, %c0_12], %13 {strides = array<i32>} : memref<16x32xf32, #tpu.memory_space<vmem>>, vector<16x32xf32>,
    return
  }
  func.func @transform_0(%arg0: i32) -> (i32, i32) {
    %c0_i32 = arith.constant 0 : i32
    %c0_i32_0 = arith.constant 0 : i32
    return %arg0, %c0_i32 : i32, i32
  }
  func.func @transform_1(%arg0: i32) -> (i32, i32) {
    %c0_i32 = arith.constant 0 : i32
    %c0_i32_0 = arith.constant 0 : i32
    %c0_i32_1 = arith.constant 0 : i32
    return %c0_i32, %c0_i32_0 : i32, i32
  }
  func.func @transform_2(%arg0: i32) -> (i32, i32) {
    %c0_i32 = arith.constant 0 : i32
    %c0_i32_0 = arith.constant 0 : i32
    %c0_i32_1 = arith.constant 0 : i32
    return %c0_i32, %c0_i32_0 : i32, i32
  }
  func.func @transform_3(%arg0: i32) -> (i32, i32) {
    %c0_i32 = arith.constant 0 : i32
    %c0_i32_0 = arith.constant 0 : i32
    %c0_i32_1 = arith.constant 0 : i32
    return %c0_i32, %c0_i32_0 : i32, i32
  }
  func.func @transform_4(%arg0: i32) -> (i32, i32) {
    %c0_i32 = arith.constant 0 : i32
    %c0_i32_0 = arith.constant 0 : i32
    %c0_i32_1 = arith.constant 0 : i32
    return %c0_i32, %c0_i32_0 : i32, i32
  }
  func.func @transform_5(%arg0: i32) -> (i32, i32) {
    %c0_i32 = arith.constant 0 : i32
    %c0_i32_0 = arith.constant 0 : i32
    return %arg0, %c0_i32 : i32, i32
  }
}

</mosaic_0001>

<llo_original>
// kernel: tpu_custom_call.1
$region0: #{tpu_custom_call.1}
  #allocation0 [shape = 'u32[]', space=smem, size = 0x4, offset = 0x4, fixed_abs, tag = 'smem constant byte address 0x4 - core index']
  #allocation1 [shape = 'u32[72,128]{1,0:T(1,128)}', space=vmem, size = 0x9000, scoped, tag = 'internal scratch']
  %s0 = inlined_call_operand.vmem [shape: bf16[16,32], index: 0, kind: input, shape index: {}]
  %s1 = inlined_call_operand.vmem [shape: bf16[32,128], index: 1, kind: input, shape index: {}]
  %s2 = inlined_call_operand.vmem [shape: f32[1,128], index: 2, kind: input, shape index: {}]
  %s3 = inlined_call_operand.vmem [shape: bf16[128,32], index: 3, kind: input, shape index: {}]
  %s4 = inlined_call_operand.vmem [shape: f32[1,32], index: 4, kind: input, shape index: {}]
  %s5 = inlined_call_operand.hbm [shape: f32[16,32], index: 5, kind: output, shape index: {}]
  %s6 = sld [smem:[#allocation0]]
  $region30: #{tpu_custom_call.1} parent=0
    _
  %s8 = ssub.s32 1, %s6
  %s9 = scalar_select 0, %s8, %s6
  $region1: #{tpu_custom_call.1} parent=0
    #allocation2 [shape = 'u8[8192]{0}', space=vmem, size = 0x2000, scoped, tag = 'output window, operand 0, single buffered']
    #allocation3 [shape = 's32[1]{0}', space=sflag, size = 0x4, scoped, tag = 'scoped memory for tpu_custom_call.1']
    %10 = vsyncpa [#allocation3], 0
    // Predicated region
    $region2: #{tpu_custom_call.1} parent=1 // pred_check
      _
    $region3: #{tpu_custom_call.1} parent=1 // pred_check_branch
      %12 = sbr.rel (0) target = $region5
    $region4: #{tpu_custom_call.1} parent=1 // pred_region
      _
    $region5: #{tpu_custom_call.1} parent=1 // pred_fallthru
      _
    // Predicated region
    $region6: #{tpu_custom_call.1} parent=1 // pred_check
      _
    $region7: #{tpu_custom_call.1} parent=1 // pred_check_branch
      %14 = sbr.rel (0) target = $region9
    $region8: #{tpu_custom_call.1} parent=1 // pred_region
      _
    $region9: #{tpu_custom_call.1} parent=1 // pred_fallthru
      _
    // Predicated region
    $region10: #{tpu_custom_call.1} parent=1 // pred_check
      _
    $region11: #{tpu_custom_call.1} parent=1 // pred_check_branch
      %16 = sbr.rel (0) target = $region13
    $region12: #{tpu_custom_call.1} parent=1 // pred_region
      _
    $region13: #{tpu_custom_call.1} parent=1 // pred_fallthru
      _
    // Predicated region
    $region14: #{tpu_custom_call.1} parent=1 // pred_check
      _
    $region15: #{tpu_custom_call.1} parent=1 // pred_check_branch
      %18 = sbr.rel (0) target = $region17
    $region16: #{tpu_custom_call.1} parent=1 // pred_region
      _
    $region17: #{tpu_custom_call.1} parent=1 // pred_fallthru
      _
    // Predicated region
    $region18: #{tpu_custom_call.1} parent=1 // pred_check
      _
    $region19: #{tpu_custom_call.1} parent=1 // pred_check_branch
      %20 = sbr.rel (0) target = $region21
    $region20: #{tpu_custom_call.1} parent=1 // pred_region
      _
    $region21: #{tpu_custom_call.1} parent=1 // pred_fallthru
      _
    %v22 = vld [vmem:[%s0] sm:$0xf]
    %v23 = vld [vmem:[%s0 + $0x4] sm:$0xf]
    %v24 = vld [vmem:[%s1] sm:$0xf]
    %v25 = vld [vmem:[%s1 + $0x4] sm:$0xf]
    %v26 = vld [vmem:[%s1 + $0x8] sm:$0xf]
    %v27 = vld [vmem:[%s1 + $0xc] sm:$0xf]
    %v28 = vld [vmem:[%s2] sm:$0x1]
    %v30 = vperm.slane %v28, 0
    %v34 = vunpack.c.l.b16 %v22
    %v35 = vunpack.c.l.b16 %v23
    %v36 = vpack.c.b16 %v35, %v34
    %v41 = vunpack.c.l.b16 %v24
    %v42 = vunpack.c.l.b16 %v25
    %v43 = vunpack.c.l.b16 %v26
    %v44 = vunpack.c.l.b16 %v27
    %v45 = vpack.c.b16 %v42, %v41
    %v46 = vpack.c.b16 %v44, %v43
    %vm49 = vcmask 261120
    %v51 = vsel %vm49, %v36, 0
    %53 = vmatpush.bf16.msra.mxu0 0
    %54 = vmatpush.bf16.msra.mxu0 0
    %55 = vmatpush.bf16.msra.mxu0 0
    %56 = vmatpush.bf16.msra.mxu0 0
    %57 = vmatpush.bf16.msra.mxu0 0
    %58 = vmatpush.bf16.msra.mxu0 0
    %59 = vmatpush.bf16.msra.mxu0 %v46
    %60 = vmatpush.bf16.msra.mxu0 %v45
    %61 = vmatmul.bf16.gmra.mxu0 %v51
    %v62 = vpop.f32.mrf.mxu0
    %v63 = vadd.f32 %v30, %v62
    %v64 = vpop.f32.mrf.mxu0
    %v65 = vadd.f32 %v30, %v64
    %66 = vdwg.mxu0
    %v67 = vmax.f32 %v63, 0.0
    %v68 = vmax.f32 %v65, 0.0
    %v69 = vpack.c.bf16 %v68, %v67
    %v70 = vld [vmem:[%s3] sm:$0xf]
    %v71 = vld [vmem:[%s3 + $0x4] sm:$0xf]
    %v72 = vld [vmem:[%s3 + $0x8] sm:$0xf]
    %v73 = vld [vmem:[%s3 + $0xc] sm:$0xf]
    %v74 = vld [vmem:[%s3 + $0x10] sm:$0xf]
    %v75 = vld [vmem:[%s3 + $0x14] sm:$0xf]
    %v76 = vld [vmem:[%s3 + $0x18] sm:$0xf]
    %v77 = vld [vmem:[%s3 + $0x1c] sm:$0xf]
    %v78 = vld [vmem:[%s3 + $0x20] sm:$0xf]
    %v79 = vld [vmem:[%s3 + $0x24] sm:$0xf]
    %v80 = vld [vmem:[%s3 + $0x28] sm:$0xf]
    %v81 = vld [vmem:[%s3 + $0x2c] sm:$0xf]
    %v82 = vld [vmem:[%s3 + $0x30] sm:$0xf]
    %v83 = vld [vmem:[%s3 + $0x34] sm:$0xf]
    %v84 = vld [vmem:[%s3 + $0x38] sm:$0xf]
    %v85 = vld [vmem:[%s3 + $0x3c] sm:$0xf]
    %v86 = vld [vmem:[%s4] sm:$0x1]
    %v88 = vperm.slane %v86, 0
    %v106 = vunpack.c.l.b16 %v70
    %v107 = vunpack.c.l.b16 %v71
    %v108 = vunpack.c.l.b16 %v72
    %v109 = vunpack.c.l.b16 %v73
    %v110 = vunpack.c.l.b16 %v74
    %v111 = vunpack.c.l.b16 %v75
    %v112 = vunpack.c.l.b16 %v76
    %v113 = vunpack.c.l.b16 %v77
    %v114 = vunpack.c.l.b16 %v78
    %v115 = vunpack.c.l.b16 %v79
    %v116 = vunpack.c.l.b16 %v80
    %v117 = vunpack.c.l.b16 %v81
    %v118 = vunpack.c.l.b16 %v82
    %v119 = vunpack.c.l.b16 %v83
    %v120 = vunpack.c.l.b16 %v84
    %v121 = vunpack.c.l.b16 %v85
    %v122 = vpack.c.b16 %v107, %v106
    %v123 = vpack.c.b16 %v109, %v108
    %v124 = vpack.c.b16 %v111, %v110
    %v125 = vpack.c.b16 %v113, %v112
    %v126 = vpack.c.b16 %v115, %v114
    %v127 = vpack.c.b16 %v117, %v116
    %v128 = vpack.c.b16 %v119, %v118
    %v129 = vpack.c.b16 %v121, %v120
    %138 = vmatpush.bf16.msra.mxu0 %v129
    %139 = vmatpush.bf16.msra.mxu0 %v128
    %140 = vmatpush.bf16.msra.mxu0 %v127
    %141 = vmatpush.bf16.msra.mxu0 %v126
    %142 = vmatpush.bf16.msra.mxu0 %v125
    %143 = vmatpush.bf16.msra.mxu0 %v124
    %144 = vmatpush.bf16.msra.mxu0 %v123
    %145 = vmatpush.bf16.msra.mxu0 %v122
    %146 = vmatmul.bf16.gmra.mxu0 %v69
    %v147 = vpop.f32.mrf.mxu0
    %v148 = vadd.f32 %v88, %v147
    %v149 = vpop.f32.mrf.mxu0
    %v150 = vadd.f32 %v88, %v149
    %151 = vdwg.mxu0
    %152 = vst.msk [vmem:[#allocation2] sm:$0xff] %vm49, %v148
    %153 = vst.msk [vmem:[#allocation2 + $0x8] sm:$0xff] %vm49, %v150
    // Predicated region
    $region22: #{tpu_custom_call.1} parent=1 // pred_check
      _
    $region23: #{tpu_custom_call.1} parent=1 // pred_check_branch
      %155 = sbr.rel (0) target = $region25
    $region24: #{tpu_custom_call.1} parent=1 // pred_region
      %157 = vsyncadd [#allocation3], 0
      %s158 = sshll.u32 [#allocation2], 4
      %s159 = int_to_ptr.vmem [resolvable:$true] %s158
      %s160 = sshll.u32 %s5, 4
      %s161 = int_to_ptr.hbm [resolvable:$true] %s160
      %166 = dma.vmem_to_hbm [thread:$0]  %s159, 256, %s161, [#allocation3], 128, 128, 8
    $region25: #{tpu_custom_call.1} parent=1 // pred_fallthru
      _
    // Predicated region
    $region26: #{tpu_custom_call.1} parent=1 // pred_check
      _
    $region27: #{tpu_custom_call.1} parent=1 // pred_check_branch
      %168 = sbr.rel (0) target = $region29
    $region28: #{tpu_custom_call.1} parent=1 // pred_region
      %170 = dma.done [#allocation3], 256
    $region29: #{tpu_custom_call.1} parent=1 // pred_fallthru
      _
    %171 = vsyncpa [#allocation3], 1

</llo_original>
